<compile_context>
chip_gen: v7x
topology: tpu7x:2x2x1
jax: 0.10.0
libtpu: 0.0.40
codegen_flags: <defaults>
</compile_context>

<pallas_src>
import functools

import jax
import jax.numpy as jnp
from jax.experimental import pallas as pl
from jax.experimental.pallas import tpu as pltpu

INPUT_NEURONS = 21
NEURONS_PER_LAYER = 200
HIDDEN_PAD = 256  # padded hidden width (full MXU tile on v6e/v7x)


def _mlp_kernel(x_ref, w_in_ref, b_in_ref, w_h_ref, b_h_ref, w_out_ref, b_out_ref,
                o_ref):
    # ---- input layer + ReLU (dropout == identity at inference) ----
    x_bf = x_ref[...].astype(jnp.bfloat16)
    h = jnp.dot(x_bf, w_in_ref[...], preferred_element_type=jnp.float32)
    h = jnp.maximum(h + b_in_ref[...], 0.0)

    # ---- three applications of the *same* hidden layer + ReLU ----
    # Hoist the weight/bias reads out of the unrolled loop (no CSE in JAX).
    w_h = w_h_ref[...]   # bf16 (HIDDEN_PAD, HIDDEN_PAD), VMEM-resident
    b_h = b_h_ref[...]   # f32  (1, HIDDEN_PAD)
    for _ in range(3):
        h = jnp.dot(h.astype(jnp.bfloat16), w_h,
                    preferred_element_type=jnp.float32)
        h = jnp.maximum(h + b_h, 0.0)

    # ---- output layer (N=1) as VPU multiply + cross-lane reduce, + sigmoid ----
    w_out_row = w_out_ref[...]                       # f32 (1, HIDDEN_PAD)
    logits = jnp.sum(h * w_out_row, axis=-1)         # (TB,)
    logits = logits + b_out_ref[0, 0]                # scalar bias from SMEM
    # Lane-dense store: o_ref block is (1, TB) -> unmasked full-lane vst.
    o_ref[...] = jax.nn.sigmoid(logits)[None, :]


def _round_up(a, m):
    return (a + m - 1) // m * m


def prepare_params(w_in, b_in, w_h, b_h, w_out, b_out):
    """One-time parameter prep: pad hidden width 200->256 and cast weights to bf16.

    Zero-padding is exact: padded input columns contribute 0, ReLU keeps padded
    hidden lanes at 0, and padded w_out columns are 0.
    Call once at load time; do NOT call per forward pass.
    """
    pad_h = HIDDEN_PAD - NEURONS_PER_LAYER
    w_in_p = jnp.pad(w_in, ((0, 0), (0, pad_h))).astype(jnp.bfloat16)     # (21, 256)
    b_in_p = jnp.pad(b_in, ((0, 0), (0, pad_h))).astype(jnp.float32)      # (1, 256)
    w_h_p = jnp.pad(w_h, ((0, pad_h), (0, pad_h))).astype(jnp.bfloat16)   # (256, 256)
    b_h_p = jnp.pad(b_h, ((0, 0), (0, pad_h))).astype(jnp.float32)        # (1, 256)
    w_out_row = jnp.pad(w_out.T, ((0, 0), (0, pad_h))).astype(jnp.float32)  # (1, 256)
    b_out_s = jnp.reshape(b_out, (1, 1)).astype(jnp.float32)              # SMEM scalar
    return w_in_p, b_in_p, w_h_p, b_h_p, w_out_row, b_out_s


@functools.partial(jax.jit, static_argnames=("tb",))
def net_forward(x, w_in_p, b_in_p, w_h_p, b_h_p, w_out_row, b_out_s, *, tb=2048):
    batch = x.shape[0]

    # --- batch tile selection ---
    # Small batches: one grid step covering the (8-rounded) batch.
    # Large batches: tile of `tb`, forced to a multiple of 128 so both the x
    # block sublanes and the lane-dense (1, tb) output block stay aligned.
    batch8 = _round_up(batch, 8)
    if batch8 <= tb:
        tb = batch8
    else:
        tb = max(128, tb - tb % 128)
    batch_p = _round_up(batch, tb)
    x_p = jnp.pad(x, ((0, batch_p - batch), (0, 0)))
    num_tiles = batch_p // tb

    resident = lambda shp: pl.BlockSpec(shp, lambda i: (0, 0))
    out = pl.pallas_call(
        _mlp_kernel,
        out_shape=jax.ShapeDtypeStruct((1, batch_p), jnp.float32),  # lane-dense
        grid=(num_tiles,),
        in_specs=[
            pl.BlockSpec((tb, INPUT_NEURONS), lambda i: (i, 0)),   # x tile (pipelined)
            resident(w_in_p.shape), resident(b_in_p.shape),
            resident(w_h_p.shape), resident(b_h_p.shape),
            resident(w_out_row.shape),
            pl.BlockSpec(memory_space=pltpu.MemorySpace.SMEM),     # scalar b_out
        ],
        out_specs=pl.BlockSpec((1, tb), lambda i: (0, i)),
        compiler_params=pltpu.CompilerParams(
            dimension_semantics=("parallel",),
            vmem_limit_bytes=32 * 1024 * 1024,
        ),
    )(x_p, w_in_p, b_in_p, w_h_p, b_h_p, w_out_row, b_out_s)
    return out[0, :batch].reshape(batch, 1)


def init_params(key):
    """Deterministic PyTorch-Linear-style init (uniform(-1/sqrt(fan_in), +))."""
    ks = jax.random.split(key, 6)

    def linear(kw, kb, fan_in, fan_out):
        bound = 1.0 / jnp.sqrt(fan_in)
        # stored as (in, out) so the math is x @ W, matching torch's x @ W.T
        w = jax.random.uniform(kw, (fan_in, fan_out), jnp.float32, -bound, bound)
        b = jax.random.uniform(kb, (1, fan_out), jnp.float32, -bound, bound)
        return w, b

    w_in, b_in = linear(ks[0], ks[1], INPUT_NEURONS, NEURONS_PER_LAYER)
    w_h, b_h = linear(ks[2], ks[3], NEURONS_PER_LAYER, NEURONS_PER_LAYER)
    w_out, b_out = linear(ks[4], ks[5], NEURONS_PER_LAYER, 1)
    return w_in, b_in, w_h, b_h, w_out, b_out


def reference_forward(x, w_in, b_in, w_h, b_h, w_out, b_out):
    h = jnp.maximum(x @ w_in + b_in, 0.0)
    for _ in range(3):
        h = jnp.maximum(h @ w_h + b_h, 0.0)
    return jax.nn.sigmoid(h @ w_out + b_out)


if __name__ == "__main__":
    key = jax.random.PRNGKey(0)
    k_x1, k_x2, k_p = jax.random.split(key, 3)

    params = init_params(k_p)
    prepped = prepare_params(*params)   # one-time pad/cast, outside the hot path

    # Case 1: small batch, not a multiple of 8 (exercises batch padding, 1 grid step).
    batch1 = 10
    x1 = jax.random.normal(k_x1, (batch1, INPUT_NEURONS), dtype=jnp.float32)
    out1 = jax.block_until_ready(net_forward(x1, *prepped))
    ref1 = reference_forward(x1, *params)
    assert out1.shape == (batch1, 1), out1.shape
    # bf16 matmuls with f32 accumulation -> loosen tolerance vs. pure-f32 reference.
    assert jnp.allclose(out1, ref1, atol=2e-2, rtol=2e-2), (out1, ref1)

    # Case 2: multi-tile grid with lane-dense (1, TB) output blocks.
    batch2 = 300
    x2 = jax.random.normal(k_x2, (batch2, INPUT_NEURONS), dtype=jnp.float32)
    out2 = jax.block_until_ready(net_forward(x2, *prepped, tb=128))
    ref2 = reference_forward(x2, *params)
    assert out2.shape == (batch2, 1), out2.shape
    assert jnp.allclose(out2, ref2, atol=2e-2, rtol=2e-2), (out2, ref2)

    print("KERNEL_OK")
</pallas_src>

<mosaic_0001>
module attributes {stable_mosaic.version = 11 : i64} {
  func.func @_mlp_kernel(%arg0: i32, %arg1: memref<16x21xf32, #tpu.memory_space<vmem>>, %arg2: memref<21x256xbf16, #tpu.memory_space<vmem>>, %arg3: memref<1x256xf32, #tpu.memory_space<vmem>>, %arg4: memref<256x256xbf16, #tpu.memory_space<vmem>>, %arg5: memref<1x256xf32, #tpu.memory_space<vmem>>, %arg6: memref<1x256xf32, #tpu.memory_space<vmem>>, %arg7: memref<1x1xf32, #tpu.memory_space<smem>>, %arg8: memref<1x16xf32, #tpu.memory_space<vmem>>) attributes {dimension_semantics = [#tpu.dimension_semantics<parallel>], iteration_bounds = array<i64: 1>, scalar_prefetch = 0 : i64, scratch_operands = 0 : i64, tpu.core_type = #tpu.core_type<tc>, window_params = [{transform_indices = @transform_0, window_bounds = array<i64: 16, 21>}, {pipeline_mode = #tpu.pipeline_mode<synchronous>, transform_indices = @transform_1, window_bounds = array<i64: 21, 256>}, {pipeline_mode = #tpu.pipeline_mode<synchronous>, transform_indices = @transform_2, window_bounds = array<i64: 1, 256>}, {pipeline_mode = #tpu.pipeline_mode<synchronous>, transform_indices = @transform_3, window_bounds = array<i64: 256, 256>}, {pipeline_mode = #tpu.pipeline_mode<synchronous>, transform_indices = @transform_4, window_bounds = array<i64: 1, 256>}, {pipeline_mode = #tpu.pipeline_mode<synchronous>, transform_indices = @transform_5, window_bounds = array<i64: 1, 256>}, {transform_indices = @transform_6, window_bounds = array<i64: 1, 1>}, {transform_indices = @transform_7, window_bounds = array<i64: 1, 16>}]} {
    %c0 = arith.constant 0 : index
    %c0_0 = arith.constant 0 : index
    %0 = vector.load %arg1[%c0, %c0_0] : memref<16x21xf32, #tpu.memory_space<vmem>>, vector<16x21xf32>
    %1 = arith.truncf %0 : vector<16x21xf32> to vector<16x21xbf16>
    %c0_1 = arith.constant 0 : index
    %c0_2 = arith.constant 0 : index
    %2 = vector.load %arg2[%c0_1, %c0_2] : memref<21x256xbf16, #tpu.memory_space<vmem>>, vector<21x256xbf16>
    %cst = arith.constant dense<0.000000e+00> : vector<16x256xf32>
    %3 = tpu.matmul %1, %2, %cst {dimension_numbers = #tpu.dot_dimension_numbers<[1], [0], [0], [1], [0, 0, 1, 1], [], []>} : vector<16x21xbf16>, vector<21x256xbf16>, vector<16x256xf32> -> vector<16x256xf32>
    %c0_3 = arith.constant 0 : index
    %c0_4 = arith.constant 0 : index
    %4 = vector.load %arg3[%c0_3, %c0_4] : memref<1x256xf32, #tpu.memory_space<vmem>>, vector<1x256xf32>
    %5 = vector.broadcast %4 : vector<1x256xf32> to vector<16x256xf32>
    %6 = arith.addf %3, %5 : vector<16x256xf32>
    %cst_5 = arith.constant 0.000000e+00 : f32
    %7 = vector.broadcast %cst_5 : f32 to vector<16x256xf32>
    %8 = arith.maximumf %6, %7 : vector<16x256xf32>
    %c0_6 = arith.constant 0 : index
    %c0_7 = arith.constant 0 : index
    %9 = vector.load %arg4[%c0_6, %c0_7] : memref<256x256xbf16, #tpu.memory_space<vmem>>, vector<256x256xbf16>
    %c0_8 = arith.constant 0 : index
    %c0_9 = arith.constant 0 : index
    %10 = vector.load %arg5[%c0_8, %c0_9] : memref<1x256xf32, #tpu.memory_space<vmem>>, vector<1x256xf32>
    %11 = arith.truncf %8 : vector<16x256xf32> to vector<16x256xbf16>
    %cst_10 = arith.constant dense<0.000000e+00> : vector<16x256xf32>
    %12 = tpu.matmul %11, %9, %cst_10 {dimension_numbers = #tpu.dot_dimension_numbers<[1], [0], [0], [1], [0, 0, 1, 1], [], []>} : vector<16x256xbf16>, vector<256x256xbf16>, vector<16x256xf32> -> vector<16x256xf32>
    %13 = vector.broadcast %10 : vector<1x256xf32> to vector<16x256xf32>
    %14 = arith.addf %12, %13 : vector<16x256xf32>
    %cst_11 = arith.constant 0.000000e+00 : f32
    %15 = vector.broadcast %cst_11 : f32 to vector<16x256xf32>
    %16 = arith.maximumf %14, %15 : vector<16x256xf32>
    %17 = arith.truncf %16 : vector<16x256xf32> to vector<16x256xbf16>
    %cst_12 = arith.constant dense<0.000000e+00> : vector<16x256xf32>
    %18 = tpu.matmul %17, %9, %cst_12 {dimension_numbers = #tpu.dot_dimension_numbers<[1], [0], [0], [1], [0, 0, 1, 1], [], []>} : vector<16x256xbf16>, vector<256x256xbf16>, vector<16x256xf32> -> vector<16x256xf32>
    %19 = vector.broadcast %10 : vector<1x256xf32> to vector<16x256xf32>
    %20 = arith.addf %18, %19 : vector<16x256xf32>
    %cst_13 = arith.constant 0.000000e+00 : f32
    %21 = vector.broadcast %cst_13 : f32 to vector<16x256xf32>
    %22 = arith.maximumf %20, %21 : vector<16x256xf32>
    %23 = arith.truncf %22 : vector<16x256xf32> to vector<16x256xbf16>
    %cst_14 = arith.constant dense<0.000000e+00> : vector<16x256xf32>
    %24 = tpu.matmul %23, %9, %cst_14 {dimension_numbers = #tpu.dot_dimension_numbers<[1], [0], [0], [1], [0, 0, 1, 1], [], []>} : vector<16x256xbf16>, vector<256x256xbf16>, vector<16x256xf32> -> vector<16x256xf32>
    %25 = vector.broadcast %10 : vector<1x256xf32> to vector<16x256xf32>
    %26 = arith.addf %24, %25 : vector<16x256xf32>
    %cst_15 = arith.constant 0.000000e+00 : f32
    %27 = vector.broadcast %cst_15 : f32 to vector<16x256xf32>
    %28 = arith.maximumf %26, %27 : vector<16x256xf32>
    %c0_16 = arith.constant 0 : index
    %c0_17 = arith.constant 0 : index
    %29 = vector.load %arg6[%c0_16, %c0_17] : memref<1x256xf32, #tpu.memory_space<vmem>>, vector<1x256xf32>
    %30 = vector.broadcast %29 : vector<1x256xf32> to vector<16x256xf32>
    %31 = arith.mulf %28, %30 : vector<16x256xf32>
    %cst_18 = arith.constant dense<0.000000e+00> : vector<16xf32>
    %32 = vector.multi_reduction <add>, %31, %cst_18 [1] : vector<16x256xf32> to vector<16xf32>
    %c0_19 = arith.constant 0 : index
    %c0_20 = arith.constant 0 : index
    %33 = memref.load %arg7[%c0_19, %c0_20] : memref<1x1xf32, #tpu.memory_space<smem>>
    %34 = vector.broadcast %33 : f32 to vector<16xf32>
    %35 = arith.addf %32, %34 : vector<16xf32>
    %36 = arith.negf %35 : vector<16xf32>
    %37 = math.exp %36 : vector<16xf32>
    %cst_21 = arith.constant 1.000000e+00 : f32
    %38 = vector.broadcast %cst_21 : f32 to vector<16xf32>
    %39 = arith.addf %38, %37 : vector<16xf32>
    %40 = arith.divf %38, %39 : vector<16xf32>
    %41 = vector.shape_cast %40 : vector<16xf32> to vector<1x16xf32>
    %c0_22 = arith.constant 0 : index
    %c0_23 = arith.constant 0 : index
    %42 = vector.load %arg8[%c0_22, %c0_23] : memref<1x16xf32, #tpu.memory_space<vmem>>, vector<1x16xf32>
    tpu.vector_store %arg8[%c0_22, %c0_23], %41 {strides = array<i32>} : memref<1x16xf32, #tpu.memory_space<vmem>>, vector<1x16xf32>,
    return
  }
  func.func @transform_0(%arg0: i32) -> (i32, i32) {
    %c0_i32 = arith.constant 0 : i32
    %c0_i32_0 = arith.constant 0 : i32
    return %arg0, %c0_i32 : i32, i32
  }
  func.func @transform_1(%arg0: i32) -> (i32, i32) {
    %c0_i32 = arith.constant 0 : i32
    %c0_i32_0 = arith.constant 0 : i32
    %c0_i32_1 = arith.constant 0 : i32
    return %c0_i32, %c0_i32_0 : i32, i32
  }
  func.func @transform_2(%arg0: i32) -> (i32, i32) {
    %c0_i32 = arith.constant 0 : i32
    %c0_i32_0 = arith.constant 0 : i32
    %c0_i32_1 = arith.constant 0 : i32
    return %c0_i32, %c0_i32_0 : i32, i32
  }
  func.func @transform_3(%arg0: i32) -> (i32, i32) {
    %c0_i32 = arith.constant 0 : i32
    %c0_i32_0 = arith.constant 0 : i32
    %c0_i32_1 = arith.constant 0 : i32
    return %c0_i32, %c0_i32_0 : i32, i32
  }
  func.func @transform_4(%arg0: i32) -> (i32, i32) {
    %c0_i32 = arith.constant 0 : i32
    %c0_i32_0 = arith.constant 0 : i32
    %c0_i32_1 = arith.constant 0 : i32
    return %c0_i32, %c0_i32_0 : i32, i32
  }
  func.func @transform_5(%arg0: i32) -> (i32, i32) {
    %c0_i32 = arith.constant 0 : i32
    %c0_i32_0 = arith.constant 0 : i32
    %c0_i32_1 = arith.constant 0 : i32
    return %c0_i32, %c0_i32_0 : i32, i32
  }
  func.func @transform_6(%arg0: i32) -> (i32, i32) {
    %c0_i32 = arith.constant 0 : i32
    %c0_i32_0 = arith.constant 0 : i32
    %c0_i32_1 = arith.constant 0 : i32
    return %c0_i32, %c0_i32_0 : i32, i32
  }
  func.func @transform_7(%arg0: i32) -> (i32, i32) {
    %c0_i32 = arith.constant 0 : i32
    %c0_i32_0 = arith.constant 0 : i32
    return %c0_i32, %arg0 : i32, i32
  }
}

</mosaic_0001>

<llo_original>
// kernel: net_forward.1
$region0: #{net_forward.1}
  #allocation0 [shape = 'u32[]', space=smem, size = 0x4, offset = 0x4, fixed_abs, tag = 'smem constant byte address 0x4 - core index']
  #allocation1 [shape = 'u32[144,128]{1,0:T(1,128)}', space=vmem, size = 0x12000, scoped, tag = 'internal scratch']
  #allocation2 [shape = 'f32[1,1]{1,0:T(1,128)S(6)}', space=smem, size = 0x200, scoped, tag = 'scoped memory for net_forward.1']
  %s0 = inlined_call_operand.vmem [shape: f32[16,21], index: 0, kind: input, shape index: {}]
  %s1 = inlined_call_operand.vmem [shape: bf16[21,256], index: 1, kind: input, shape index: {}]
  %s2 = inlined_call_operand.vmem [shape: f32[1,256], index: 2, kind: input, shape index: {}]
  %s3 = inlined_call_operand.hbm [shape: bf16[256,256], index: 3, kind: input, shape index: {}]
  %s4 = inlined_call_operand.vmem [shape: f32[1,256], index: 4, kind: input, shape index: {}]
  %s5 = inlined_call_operand.vmem [shape: f32[1,256], index: 5, kind: input, shape index: {}]
  %s6 = inlined_call_operand.<no memory space> [shape: f32[1,1], index: 6, kind: input, shape index: {}]
  %s7 = inlined_call_operand.vmem [shape: f32[1,16], index: 7, kind: output, shape index: {}]
  %s8 = sld [smem:[#allocation0]]
  $region42: #{net_forward.1} parent=0
    _
  %s10 = ssub.s32 1, %s8
  %s11 = scalar_select 0, %s10, %s8
  %12 = sst [smem:[#allocation2]] %s6
  $region1: #{net_forward.1} parent=0
    #allocation3 [shape = 'u8[131072]{0}', space=vmem, size = 0x20000, scoped, tag = 'input window, operand 3, single buffered']
    #allocation4 [shape = 's32[1]{0}', space=sflag, size = 0x4, scoped, tag = 'scoped memory for net_forward.1']
    %13 = vsyncpa [#allocation4], 0
    // Predicated region
    $region2: #{net_forward.1} parent=1 // pred_check
      _
    $region3: #{net_forward.1} parent=1 // pred_check_branch
      %15 = sbr.rel (0) target = $region5
    $region4: #{net_forward.1} parent=1 // pred_region
      _
    $region5: #{net_forward.1} parent=1 // pred_fallthru
      _
    // Predicated region
    $region6: #{net_forward.1} parent=1 // pred_check
      _
    $region7: #{net_forward.1} parent=1 // pred_check_branch
      %17 = sbr.rel (0) target = $region9
    $region8: #{net_forward.1} parent=1 // pred_region
      _
    $region9: #{net_forward.1} parent=1 // pred_fallthru
      _
    // Predicated region
    $region10: #{net_forward.1} parent=1 // pred_check
      _
    $region11: #{net_forward.1} parent=1 // pred_check_branch
      %19 = sbr.rel (0) target = $region13
    $region12: #{net_forward.1} parent=1 // pred_region
      _
    $region13: #{net_forward.1} parent=1 // pred_fallthru
      _
    // Predicated region
    $region14: #{net_forward.1} parent=1 // pred_check
      _
    $region15: #{net_forward.1} parent=1 // pred_check_branch
      %21 = sbr.rel (0) target = $region17
    $region16: #{net_forward.1} parent=1 // pred_region
      %s23 = ssub.s32 4096, 4096
      %24 = vsyncadd [#allocation4], %s23
      %s25 = sshll.u32 [#allocation3], 4
      %s26 = int_to_ptr.vmem [resolvable:$true] %s25
      %31 = dma.hbm_to_vmem [thread:$0]  %s3, 4096, %s26, [#allocation4], 128, 128, 8
    $region17: #{net_forward.1} parent=1 // pred_fallthru
      _
    // Predicated region
    $region18: #{net_forward.1} parent=1 // pred_check
      _
    $region19: #{net_forward.1} parent=1 // pred_check_branch
      %33 = sbr.rel (0) target = $region21
    $region20: #{net_forward.1} parent=1 // pred_region
      _
    $region21: #{net_forward.1} parent=1 // pred_fallthru
      _
    // Predicated region
    $region22: #{net_forward.1} parent=1 // pred_check
      _
    $region23: #{net_forward.1} parent=1 // pred_check_branch
      %35 = sbr.rel (0) target = $region25
    $region24: #{net_forward.1} parent=1 // pred_region
      _
    $region25: #{net_forward.1} parent=1 // pred_fallthru
      _
    // Predicated region
    $region26: #{net_forward.1} parent=1 // pred_check
      _
    $region27: #{net_forward.1} parent=1 // pred_check_branch
      %37 = sbr.rel (0) target = $region29
    $region28: #{net_forward.1} parent=1 // pred_region
      _
    $region29: #{net_forward.1} parent=1 // pred_fallthru
      _
    // Predicated region
    $region30: #{net_forward.1} parent=1 // pred_check
      _
    $region31: #{net_forward.1} parent=1 // pred_check_branch
      %39 = sbr.rel (0) target = $region33
    $region32: #{net_forward.1} parent=1 // pred_region
      %40 = dma.done [#allocation4], 4096
    $region33: #{net_forward.1} parent=1 // pred_fallthru
      _
    %v42 = vld [vmem:[%s0] sm:$0xff]
    %v43 = vld [vmem:[%s0 + $0x8] sm:$0xff]
    %v44 = vpack.c.bf16 %v43, %v42
    %v45 = vld [vmem:[%s1] sm:$0xff]
    %v46 = vld [vmem:[%s1 + $0x8] sm:$0xff]
    %v47 = vld [vmem:[%s1 + $0x10] sm:$0x77]
    %v48 = vld [vmem:[%s2] sm:$0x3]
    %v50 = vlaneseq
    %v51 = vshrl.u32 %v50, 7
    %v52 = vsub.s32 0, %v51
    %v53 = vrot.slane %v48, %v52
    %v54 = vlaneseq
    %v55 = vshrl.u32 %v54, 7
    %v56 = vsub.s32 1, %v55
    %v57 = vrot.slane %v48, %v56
    %v63 = vunpack.c.l.b16 %v45
    %v64 = vunpack.c.h.b16 %v45
    %v65 = vunpack.c.l.b16 %v46
    %v66 = vunpack.c.h.b16 %v46
    %v67 = vunpack.c.l.b16 %v47
    %v68 = vunpack.c.h.b16 %v47
    %v69 = vpack.c.b16 %v65, %v63
    %v70 = vpack.c.b16 %v66, %v64
    %v71 = vpack.c.b16 %v67, %v67
    %v72 = vpack.c.b16 %v68, %v68
    %vm75 = vcmask 171008
    %v77 = vsel %vm75, %v44, 0
    %vm79 = vcmask 1041408
    %vm80 = vcmask 1042432
    %v81 = vsel %vm79, 4294967295, 65535
    %v82 = vsel %vm80, %v81, 0
    %v84 = vand.u32 %v71, %v82
    %v87 = vand.u32 %v72, %v82
    %89 = vmatprep.subr.bf16.mxu0 %v70
    %90 = vmatpush1.bf16.msra.mxu0 %v69
    %91 = vmatprep.subr.bf16.mxu0 %v87
    %92 = vmatpush1.bf16.msra.mxu0 %v84
    %93 = vmatprep.subr.bf16.mxu0 0
    %94 = vmatpush1.bf16.msra.mxu0 0
    %95 = vmatprep.subr.bf16.mxu0 0
    %96 = vmatpush1.bf16.msra.mxu0 0
    %97 = vmatprep.subr.bf16.mxu0 0
    %98 = vmatpush1.bf16.msra.mxu0 0
    %99 = vmatprep.subr.bf16.mxu0 0
    %100 = vmatpush1.bf16.msra.mxu0 0
    %101 = vmatprep.subr.bf16.mxu0 0
    %102 = vmatpush1.bf16.msra.mxu0 0
    %103 = vmatprep.subr.bf16.mxu0 0
    %104 = vmatpush1.bf16.msra.mxu0 0
    %105 = vmatprep.subr.bf16.mxu0 0
    %106 = vmatpush1.bf16.msra.mxu0 0
    %107 = vmatprep.subr.bf16.mxu0 0
    %108 = vmatpush1.bf16.msra.mxu0 0
    %109 = vmatprep.subr.bf16.mxu0 0
    %110 = vmatpush1.bf16.msra.mxu0 0
    %111 = vmatprep.subr.bf16.mxu0 0
    %112 = vmatpush1.bf16.msra.mxu0 0
    %113 = vmatprep.subr.bf16.mxu0 0
    %114 = vmatpush1.bf16.msra.mxu0 0
    %115 = vmatprep.subr.bf16.mxu0 0
    %116 = vmatpush1.bf16.msra.mxu0 0
    %117 = vmatprep.subr.bf16.mxu0 0
    %118 = vmatpush1.bf16.msra.mxu0 0
    %119 = vmatprep.subr.bf16.mxu0 0
    %120 = vmatpush1.bf16.msra.mxu0 0
    %121 = vmatprep.mubr.bf16.mxu0 0
    %122 = vmatmul.mubr.bf16.gmra.mrb[0].mxu0 %v77
    %v123 = vpop.f32.mrb[0].mxu0
    %v124 = vadd.f32 %v53, %v123
    %v125 = vpop.f32.mrb[0].mxu0
    %v126 = vadd.f32 %v57, %v125
    %v127 = vpop.f32.mrb[0].mxu0
    %v128 = vadd.f32 %v53, %v127
    %v129 = vpop.f32.mrb[0].mxu0
    %v130 = vadd.f32 %v57, %v129
    %131 = vdwg.mxu0
    %v132 = vmax.f32 %v124, 0.0
    %v133 = vmax.f32 %v126, 0.0
    %v134 = vmax.f32 %v128, 0.0
    %v135 = vmax.f32 %v130, 0.0
    %v136 = vld [vmem:[#allocation3] sm:$0xff]
    %v137 = vld [vmem:[#allocation3 + $0x8] sm:$0xff]
    %v138 = vld [vmem:[#allocation3 + $0x10] sm:$0xff]
    %v139 = vld [vmem:[#allocation3 + $0x18] sm:$0xff]
    %v140 = vld [vmem:[#allocation3 + $0x20] sm:$0xff]
    %v141 = vld [vmem:[#allocation3 + $0x28] sm:$0xff]
    %v142 = vld [vmem:[#allocation3 + $0x30] sm:$0xff]
    %v143 = vld [vmem:[#allocation3 + $0x38] sm:$0xff]
    %v144 = vld [vmem:[#allocation3 + $0x40] sm:$0xff]
    %v145 = vld [vmem:[#allocation3 + $0x48] sm:$0xff]
    %v146 = vld [vmem:[#allocation3 + $0x50] sm:$0xff]
    %v147 = vld [vmem:[#allocation3 + $0x58] sm:$0xff]
    %v148 = vld [vmem:[#allocation3 + $0x60] sm:$0xff]
    %v149 = vld [vmem:[#allocation3 + $0x68] sm:$0xff]
    %v150 = vld [vmem:[#allocation3 + $0x70] sm:$0xff]
    %v151 = vld [vmem:[#allocation3 + $0x78] sm:$0xff]
    %v152 = vld [vmem:[#allocation3 + $0x80] sm:$0xff]
    %v153 = vld [vmem:[#allocation3 + $0x88] sm:$0xff]
    %v154 = vld [vmem:[#allocation3 + $0x90] sm:$0xff]
    %v155 = vld [vmem:[#allocation3 + $0x98] sm:$0xff]
    %v156 = vld [vmem:[#allocation3 + $0xa0] sm:$0xff]
    %v157 = vld [vmem:[#allocation3 + $0xa8] sm:$0xff]
    %v158 = vld [vmem:[#allocation3 + $0xb0] sm:$0xff]
    %v159 = vld [vmem:[#allocation3 + $0xb8] sm:$0xff]
    %v160 = vld [vmem:[#allocation3 + $0xc0] sm:$0xff]
    %v161 = vld [vmem:[#allocation3 + $0xc8] sm:$0xff]
    %v162 = vld [vmem:[#allocation3 + $0xd0] sm:$0xff]
    %v163 = vld [vmem:[#allocation3 + $0xd8] sm:$0xff]
    %v164 = vld [vmem:[#allocation3 + $0xe0] sm:$0xff]
    %v165 = vld [vmem:[#allocation3 + $0xe8] sm:$0xff]
    %v166 = vld [vmem:[#allocation3 + $0xf0] sm:$0xff]
    %v167 = vld [vmem:[#allocation3 + $0xf8] sm:$0xff]
    %v168 = vld [vmem:[%s4] sm:$0x3]
    %v169 = vpack.c.bf16 %v134, %v132
    %v170 = vpack.c.bf16 %v135, %v133
    %v172 = vlaneseq
    %v173 = vshrl.u32 %v172, 7
    %v174 = vsub.s32 0, %v173
    %v175 = vrot.slane %v168, %v174
    %v176 = vlaneseq
    %v177 = vshrl.u32 %v176, 7
    %v178 = vsub.s32 1, %v177
    %v179 = vrot.slane %v168, %v178
    %v214 = vunpack.c.l.b16 %v136
    %v215 = vunpack.c.h.b16 %v136
    %v216 = vunpack.c.l.b16 %v137
    %v217 = vunpack.c.h.b16 %v137
    %v218 = vunpack.c.l.b16 %v138
    %v219 = vunpack.c.h.b16 %v138
    %v220 = vunpack.c.l.b16 %v139
    %v221 = vunpack.c.h.b16 %v139
    %v222 = vunpack.c.l.b16 %v140
    %v223 = vunpack.c.h.b16 %v140
    %v224 = vunpack.c.l.b16 %v141
    %v225 = vunpack.c.h.b16 %v141
    %v226 = vunpack.c.l.b16 %v142
    %v227 = vunpack.c.h.b16 %v142
    %v228 = vunpack.c.l.b16 %v143
    %v229 = vunpack.c.h.b16 %v143
    %v230 = vunpack.c.l.b16 %v144
    %v231 = vunpack.c.h.b16 %v144
    %v232 = vunpack.c.l.b16 %v145
    %v233 = vunpack.c.h.b16 %v145
    %v234 = vunpack.c.l.b16 %v146
    %v235 = vunpack.c.h.b16 %v146
    %v236 = vunpack.c.l.b16 %v147
    %v237 = vunpack.c.h.b16 %v147
    %v238 = vunpack.c.l.b16 %v148
    %v239 = vunpack.c.h.b16 %v148
    %v240 = vunpack.c.l.b16 %v149
    %v241 = vunpack.c.h.b16 %v149
    %v242 = vunpack.c.l.b16 %v150
    %v243 = vunpack.c.h.b16 %v150
    %v244 = vunpack.c.l.b16 %v151
    %v245 = vunpack.c.h.b16 %v151
    %v246 = vunpack.c.l.b16 %v152
    %v247 = vunpack.c.h.b16 %v152
    %v248 = vunpack.c.l.b16 %v153
    %v249 = vunpack.c.h.b16 %v153
    %v250 = vunpack.c.l.b16 %v154
    %v251 = vunpack.c.h.b16 %v154
    %v252 = vunpack.c.l.b16 %v155
    %v253 = vunpack.c.h.b16 %v155
    %v254 = vunpack.c.l.b16 %v156
    %v255 = vunpack.c.h.b16 %v156
    %v256 = vunpack.c.l.b16 %v157
    %v257 = vunpack.c.h.b16 %v157
    %v258 = vunpack.c.l.b16 %v158
    %v259 = vunpack.c.h.b16 %v158
    %v260 = vunpack.c.l.b16 %v159
    %v261 = vunpack.c.h.b16 %v159
    %v262 = vunpack.c.l.b16 %v160
    %v263 = vunpack.c.h.b16 %v160
    %v264 = vunpack.c.l.b16 %v161
    %v265 = vunpack.c.h.b16 %v161
    %v266 = vunpack.c.l.b16 %v162
    %v267 = vunpack.c.h.b16 %v162
    %v268 = vunpack.c.l.b16 %v163
    %v269 = vunpack.c.h.b16 %v163
    %v270 = vunpack.c.l.b16 %v164
    %v271 = vunpack.c.h.b16 %v164
    %v272 = vunpack.c.l.b16 %v165
    %v273 = vunpack.c.h.b16 %v165
    %v274 = vunpack.c.l.b16 %v166
    %v275 = vunpack.c.h.b16 %v166
    %v276 = vunpack.c.l.b16 %v167
    %v277 = vunpack.c.h.b16 %v167
    %v278 = vpack.c.b16 %v216, %v214
    %v279 = vpack.c.b16 %v217, %v215
    %v280 = vpack.c.b16 %v220, %v218
    %v281 = vpack.c.b16 %v221, %v219
    %v282 = vpack.c.b16 %v224, %v222
    %v283 = vpack.c.b16 %v225, %v223
    %v284 = vpack.c.b16 %v228, %v226
    %v285 = vpack.c.b16 %v229, %v227
    %v286 = vpack.c.b16 %v232, %v230
    %v287 = vpack.c.b16 %v233, %v231
    %v288 = vpack.c.b16 %v236, %v234
    %v289 = vpack.c.b16 %v237, %v235
    %v290 = vpack.c.b16 %v240, %v238
    %v291 = vpack.c.b16 %v241, %v239
    %v292 = vpack.c.b16 %v244, %v242
    %v293 = vpack.c.b16 %v245, %v243
    %v294 = vpack.c.b16 %v248, %v246
    %v295 = vpack.c.b16 %v249, %v247
    %v296 = vpack.c.b16 %v252, %v250
    %v297 = vpack.c.b16 %v253, %v251
    %v298 = vpack.c.b16 %v256, %v254
    %v299 = vpack.c.b16 %v257, %v255
    %v300 = vpack.c.b16 %v260, %v258
    %v301 = vpack.c.b16 %v261, %v259
    %v302 = vpack.c.b16 %v264, %v262
    %v303 = vpack.c.b16 %v265, %v263
    %v304 = vpack.c.b16 %v268, %v266
    %v305 = vpack.c.b16 %v269, %v267
    %v306 = vpack.c.b16 %v272, %v270
    %v307 = vpack.c.b16 %v273, %v271
    %v308 = vpack.c.b16 %v276, %v274
    %v309 = vpack.c.b16 %v277, %v275
    %342 = vmatprep.subr.bf16.mxu0 %v279
    %343 = vmatpush1.bf16.msra.mxu0 %v278
    %344 = vmatprep.subr.bf16.mxu0 %v281
    %345 = vmatpush1.bf16.msra.mxu0 %v280
    %346 = vmatprep.subr.bf16.mxu0 %v283
    %347 = vmatpush1.bf16.msra.mxu0 %v282
    %348 = vmatprep.subr.bf16.mxu0 %v285
    %349 = vmatpush1.bf16.msra.mxu0 %v284
    %350 = vmatprep.subr.bf16.mxu0 %v287
    %351 = vmatpush1.bf16.msra.mxu0 %v286
    %352 = vmatprep.subr.bf16.mxu0 %v289
    %353 = vmatpush1.bf16.msra.mxu0 %v288
    %354 = vmatprep.subr.bf16.mxu0 %v291
    %355 = vmatpush1.bf16.msra.mxu0 %v290
    %356 = vmatprep.subr.bf16.mxu0 %v293
    %357 = vmatpush1.bf16.msra.mxu0 %v292
    %358 = vmatprep.subr.bf16.mxu0 %v295
    %359 = vmatpush1.bf16.msra.mxu0 %v294
    %360 = vmatprep.subr.bf16.mxu0 %v297
    %361 = vmatpush1.bf16.msra.mxu0 %v296
    %362 = vmatprep.subr.bf16.mxu0 %v299
    %363 = vmatpush1.bf16.msra.mxu0 %v298
    %364 = vmatprep.subr.bf16.mxu0 %v301
    %365 = vmatpush1.bf16.msra.mxu0 %v300
    %366 = vmatprep.subr.bf16.mxu0 %v303
    %367 = vmatpush1.bf16.msra.mxu0 %v302
    %368 = vmatprep.subr.bf16.mxu0 %v305
    %369 = vmatpush1.bf16.msra.mxu0 %v304
    %370 = vmatprep.subr.bf16.mxu0 %v307
    %371 = vmatpush1.bf16.msra.mxu0 %v306
    %372 = vmatprep.subr.bf16.mxu0 %v309
    %373 = vmatpush1.bf16.msra.mxu0 %v308
    %374 = vmatprep.mubr.bf16.mxu0 %v170
    %375 = vmatmul.mubr.bf16.gmra.mrb[0].mxu0 %v169
    %v376 = vpop.f32.mrb[0].mxu0
    %v377 = vadd.f32 %v175, %v376
    %v378 = vpop.f32.mrb[0].mxu0
    %v379 = vadd.f32 %v179, %v378
    %v380 = vpop.f32.mrb[0].mxu0
    %v381 = vadd.f32 %v175, %v380
    %v382 = vpop.f32.mrb[0].mxu0
    %v383 = vadd.f32 %v179, %v382
    %384 = vdwg.mxu0
    %v385 = vmax.f32 %v377, 0.0
    %v386 = vmax.f32 %v379, 0.0
    %v387 = vmax.f32 %v381, 0.0
    %v388 = vmax.f32 %v383, 0.0
    %v389 = vpack.c.bf16 %v387, %v385
    %v390 = vpack.c.bf16 %v388, %v386
    %391 = vmatprep.subr.bf16.mxu0 %v279
    %392 = vmatpush1.bf16.msra.mxu0 %v278
    %393 = vmatprep.subr.bf16.mxu0 %v281
    %394 = vmatpush1.bf16.msra.mxu0 %v280
    %395 = vmatprep.subr.bf16.mxu0 %v283
    %396 = vmatpush1.bf16.msra.mxu0 %v282
    %397 = vmatprep.subr.bf16.mxu0 %v285
    %398 = vmatpush1.bf16.msra.mxu0 %v284
    %399 = vmatprep.subr.bf16.mxu0 %v287
    %400 = vmatpush1.bf16.msra.mxu0 %v286
    %401 = vmatprep.subr.bf16.mxu0 %v289
    %402 = vmatpush1.bf16.msra.mxu0 %v288
    %403 = vmatprep.subr.bf16.mxu0 %v291
    %404 = vmatpush1.bf16.msra.mxu0 %v290
    %405 = vmatprep.subr.bf16.mxu0 %v293
    %406 = vmatpush1.bf16.msra.mxu0 %v292
    %407 = vmatprep.subr.bf16.mxu0 %v295
    %408 = vmatpush1.bf16.msra.mxu0 %v294
    %409 = vmatprep.subr.bf16.mxu0 %v297
    %410 = vmatpush1.bf16.msra.mxu0 %v296
    %411 = vmatprep.subr.bf16.mxu0 %v299
    %412 = vmatpush1.bf16.msra.mxu0 %v298
    %413 = vmatprep.subr.bf16.mxu0 %v301
    %414 = vmatpush1.bf16.msra.mxu0 %v300
    %415 = vmatprep.subr.bf16.mxu0 %v303
    %416 = vmatpush1.bf16.msra.mxu0 %v302
    %417 = vmatprep.subr.bf16.mxu0 %v305
    %418 = vmatpush1.bf16.msra.mxu0 %v304
    %419 = vmatprep.subr.bf16.mxu0 %v307
    %420 = vmatpush1.bf16.msra.mxu0 %v306
    %421 = vmatprep.subr.bf16.mxu0 %v309
    %422 = vmatpush1.bf16.msra.mxu0 %v308
    %423 = vmatprep.mubr.bf16.mxu0 %v390
    %424 = vmatmul.mubr.bf16.gmra.mrb[0].mxu0 %v389
    %v425 = vpop.f32.mrb[0].mxu0
    %v426 = vadd.f32 %v175, %v425
    %v427 = vpop.f32.mrb[0].mxu0
    %v428 = vadd.f32 %v179, %v427
    %v429 = vpop.f32.mrb[0].mxu0
    %v430 = vadd.f32 %v175, %v429
    %v431 = vpop.f32.mrb[0].mxu0
    %v432 = vadd.f32 %v179, %v431
    %433 = vdwg.mxu0
    %v434 = vmax.f32 %v426, 0.0
    %v435 = vmax.f32 %v428, 0.0
    %v436 = vmax.f32 %v430, 0.0
    %v437 = vmax.f32 %v432, 0.0
    %v438 = vpack.c.bf16 %v436, %v434
    %v439 = vpack.c.bf16 %v437, %v435
    %440 = vmatprep.subr.bf16.mxu0 %v279
    %441 = vmatpush1.bf16.msra.mxu0 %v278
    %442 = vmatprep.subr.bf16.mxu0 %v281
    %443 = vmatpush1.bf16.msra.mxu0 %v280
    %444 = vmatprep.subr.bf16.mxu0 %v283
    %445 = vmatpush1.bf16.msra.mxu0 %v282
    %446 = vmatprep.subr.bf16.mxu0 %v285
    %447 = vmatpush1.bf16.msra.mxu0 %v284
    %448 = vmatprep.subr.bf16.mxu0 %v287
    %449 = vmatpush1.bf16.msra.mxu0 %v286
    %450 = vmatprep.subr.bf16.mxu0 %v289
    %451 = vmatpush1.bf16.msra.mxu0 %v288
    %452 = vmatprep.subr.bf16.mxu0 %v291
    %453 = vmatpush1.bf16.msra.mxu0 %v290
    %454 = vmatprep.subr.bf16.mxu0 %v293
    %455 = vmatpush1.bf16.msra.mxu0 %v292
    %456 = vmatprep.subr.bf16.mxu0 %v295
    %457 = vmatpush1.bf16.msra.mxu0 %v294
    %458 = vmatprep.subr.bf16.mxu0 %v297
    %459 = vmatpush1.bf16.msra.mxu0 %v296
    %460 = vmatprep.subr.bf16.mxu0 %v299
    %461 = vmatpush1.bf16.msra.mxu0 %v298
    %462 = vmatprep.subr.bf16.mxu0 %v301
    %463 = vmatpush1.bf16.msra.mxu0 %v300
    %464 = vmatprep.subr.bf16.mxu0 %v303
    %465 = vmatpush1.bf16.msra.mxu0 %v302
    %466 = vmatprep.subr.bf16.mxu0 %v305
    %467 = vmatpush1.bf16.msra.mxu0 %v304
    %468 = vmatprep.subr.bf16.mxu0 %v307
    %469 = vmatpush1.bf16.msra.mxu0 %v306
    %470 = vmatprep.subr.bf16.mxu0 %v309
    %471 = vmatpush1.bf16.msra.mxu0 %v308
    %472 = vmatprep.mubr.bf16.mxu0 %v439
    %473 = vmatmul.mubr.bf16.gmra.mrb[0].mxu0 %v438
    %v474 = vpop.f32.mrb[0].mxu0
    %v475 = vadd.f32 %v175, %v474
    %v476 = vpop.f32.mrb[0].mxu0
    %v477 = vadd.f32 %v179, %v476
    %v478 = vpop.f32.mrb[0].mxu0
    %v479 = vadd.f32 %v175, %v478
    %v480 = vpop.f32.mrb[0].mxu0
    %v481 = vadd.f32 %v179, %v480
    %482 = vdwg.mxu0
    %v483 = vmax.f32 %v475, 0.0
    %v484 = vmax.f32 %v477, 0.0
    %v485 = vmax.f32 %v479, 0.0
    %v486 = vmax.f32 %v481, 0.0
    %v487 = vld [vmem:[%s5] sm:$0x3]
    %v489 = vlaneseq
    %v490 = vshrl.u32 %v489, 7
    %v491 = vsub.s32 0, %v490
    %v492 = vrot.slane %v487, %v491
    %v493 = vlaneseq
    %v494 = vshrl.u32 %v493, 7
    %v495 = vsub.s32 1, %v494
    %v496 = vrot.slane %v487, %v495
    %v499 = vmul.f32 %v483, %v492
    %v500 = vmul.f32 %v484, %v496
    %v501 = vmul.f32 %v485, %v492
    %v502 = vmul.f32 %v486, %v496
    %v503 = vadd.f32 %v499, %v500
    %504 = vadd.xlane.f32.xlu0 %v503
    %v505 = vpop.xlane.xlu0 %504
    %v506 = vadd.f32 %v501, %v502
    %507 = vadd.xlane.f32.xlu0 %v506
    %v508 = vpop.xlane.xlu0 %507
    %s509 = sld [smem:[#allocation2]]
    %v510 = vstv %s509
    %v511 = vadd.f32 %v505, %v510
    %v512 = vadd.f32 %v508, %v510
    %v513 = vxor.u32 %v511, 2147483648
    %v514 = vxor.u32 %v512, 2147483648
    %v515 = vmul.f32 %v513, 1.442695
    %v516 = vpow.pop %v515
    %v517 = vmul.f32 %v514, 1.442695
    %v518 = vpow.pop %v517
    %v519 = vadd.f32 %v516, 1.0
    %v520 = vadd.f32 %v518, 1.0
    %v521 = vrcp.pop %v519
    %v522 = vmul.f32 1.0, %v521
    %v523 = vrcp.pop %v520
    %v524 = vmul.f32 1.0, %v523
    %v527 = vlaneseq
    %v528 = vand.u32 %v527, 127
    %v529 = vlaneseq
    %v530 = vshrl.u32 %v529, 7
    %v531 = vsub.s32 %v528, %v530
    %v532 = vrot.slane %v522, %v531
    %v533 = vadd.s32 %v528, 4294967288
    %v534 = vlaneseq
    %v535 = vshrl.u32 %v534, 7
    %v536 = vsub.s32 %v533, %v535
    %v537 = vrot.slane %v524, %v536
    %vm538 = vcmask 130112
    %v539 = vsel %vm538, %v537, %v532
    %vm541 = vcmask 122880
    %542 = vst.msk [vmem:[%s7] sm:$0x1] %vm541, %v539
    // Predicated region
    $region34: #{net_forward.1} parent=1 // pred_check
      _
    $region35: #{net_forward.1} parent=1 // pred_check_branch
      %544 = sbr.rel (0) target = $region37
    $region36: #{net_forward.1} parent=1 // pred_region
      _
    $region37: #{net_forward.1} parent=1 // pred_fallthru
      _
    // Predicated region
    $region38: #{net_forward.1} parent=1 // pred_check
      _
    $region39: #{net_forward.1} parent=1 // pred_check_branch
      %546 = sbr.rel (0) target = $region41
    $region40: #{net_forward.1} parent=1 // pred_region
      _
    $region41: #{net_forward.1} parent=1 // pred_fallthru
      _
    %547 = vsyncpa [#allocation4], 1

</llo_original>
